<compile_context>
chip_gen: v7x
topology: tpu7x:2x2x1
jax: 0.10.0
libtpu: 0.0.40
codegen_flags: <defaults>
</compile_context>

<pallas_src>
import jax
import jax.numpy as jnp
from jax.experimental import pallas as pl
from jax.experimental.pallas import tpu as pltpu

LANE = 128  # vreg lane width


def _round_up(n, m):
    return ((n + m - 1) // m) * m


def _pad2(a, rows, cols):
    r, c = a.shape
    return jnp.pad(a, ((0, rows - r), (0, cols - c)))


def _qnet_kernel(x_ref, w1_ref, b1_ref, w2_ref, b2_ref, w3_ref, b3_ref, o_ref):
    # One batch tile per grid step; weights/biases are VMEM-resident.
    # Matmul operands in the weights' dtype, f32 accumulation, f32 epilogue.
    x = x_ref[...].astype(w1_ref.dtype)

    h1 = jnp.dot(x, w1_ref[...], preferred_element_type=jnp.float32) + b1_ref[...]
    h1 = jnp.maximum(h1, 0.0)

    h2 = jnp.dot(h1.astype(w2_ref.dtype), w2_ref[...],
                 preferred_element_type=jnp.float32) + b2_ref[...]
    h2 = jnp.maximum(h2, 0.0)

    out = jnp.dot(h2.astype(w3_ref.dtype), w3_ref[...],
                  preferred_element_type=jnp.float32) + b3_ref[...]
    o_ref[...] = out.astype(o_ref.dtype)


def prepare_params(params, *, matmul_dtype=jnp.bfloat16):
    """One-time layout prep: pad hidden dims to 128 lanes, cast weights for the MXU.

    params: w1 (in, 64), b1 (64,), w2 (64, 64), b2 (64,), w3 (64, out), b3 (out,)
            with weights stored as (in, out) so the kernel computes x @ W.
    """
    w1, b1 = params["w1"], params["b1"]
    w2, b2 = params["w2"], params["b2"]
    w3, b3 = params["w3"], params["b3"]

    in_size, hid = w1.shape
    out_size = w3.shape[1]
    hid_p = _round_up(hid, LANE)

    # K of the first matmul stays at the true input width (matches unpadded x).
    w1_p = _pad2(w1.astype(jnp.float32), in_size, hid_p).astype(matmul_dtype)
    w2_p = _pad2(w2.astype(jnp.float32), hid_p, hid_p).astype(matmul_dtype)
    w3_p = _pad2(w3.astype(jnp.float32), hid_p, out_size).astype(matmul_dtype)
    b1_p = _pad2(b1.reshape(1, -1).astype(jnp.float32), 1, hid_p)
    b2_p = _pad2(b2.reshape(1, -1).astype(jnp.float32), 1, hid_p)
    b3_p = b3.reshape(1, -1).astype(jnp.float32)

    return {"w1": w1_p, "b1": b1_p, "w2": w2_p, "b2": b2_p, "w3": w3_p, "b3": b3_p}


def qnetwork_forward(x, prepared, *, block_b=1024):
    """x: (B, input_size) float32. prepared: output of prepare_params()."""
    w1, b1 = prepared["w1"], prepared["b1"]
    w2, b2 = prepared["w2"], prepared["b2"]
    w3, b3 = prepared["w3"], prepared["b3"]

    B, in_size = x.shape
    assert w1.shape[0] == in_size, "prepared params do not match input width"
    hid_p = w1.shape[1]
    out_size = w3.shape[1]

    # Batch tile: multiple of 16, capped at ~cdiv(B, 2) so large batches always
    # yield >= 2 grid steps (keeps both v7x TensorCores busy; no-op on v5e/v6e).
    bb = max(16, min(_round_up(block_b, 16), _round_up(pl.cdiv(B, 2), 16)))
    grid = (pl.cdiv(B, bb),)

    x_spec = pl.BlockSpec((bb, in_size), lambda i: (i, 0))
    o_spec = pl.BlockSpec((bb, out_size), lambda i: (i, 0))

    def resident(a):  # full-array block, stays in VMEM across the batch grid
        return pl.BlockSpec(a.shape, lambda i: (0, 0))

    flops = 2 * B * (in_size * hid_p + hid_p * hid_p + hid_p * out_size)
    param_bytes = sum(
        int(a.size) * a.dtype.itemsize for a in (w1, b1, w2, b2, w3, b3))
    bytes_accessed = int(B * in_size * 4 + param_bytes + B * out_size * 4)

    return pl.pallas_call(
        _qnet_kernel,
        out_shape=jax.ShapeDtypeStruct((B, out_size), jnp.float32),
        grid=grid,
        in_specs=[
            x_spec,
            resident(w1), resident(b1),
            resident(w2), resident(b2),
            resident(w3), resident(b3),
        ],
        out_specs=o_spec,
        compiler_params=pltpu.CompilerParams(dimension_semantics=("parallel",)),
        cost_estimate=pl.CostEstimate(
            flops=flops, transcendentals=0, bytes_accessed=bytes_accessed),
    )(x.astype(jnp.float32), w1, b1, w2, b2, w3, b3)


def init_params(key, input_size, output_size, hidden=64):
    """Deterministic synthetic init (uniform, PyTorch-Linear-style bound)."""
    ks = jax.random.split(key, 6)

    def linear(kw, kb, fan_in, fan_out):
        bound = 1.0 / jnp.sqrt(fan_in)
        # stored as (in, out) so the kernel computes x @ W
        w = jax.random.uniform(kw, (fan_in, fan_out), jnp.float32, -bound, bound)
        b = jax.random.uniform(kb, (fan_out,), jnp.float32, -bound, bound)
        return w, b

    w1, b1 = linear(ks[0], ks[1], input_size, hidden)
    w2, b2 = linear(ks[2], ks[3], hidden, hidden)
    w3, b3 = linear(ks[4], ks[5], hidden, output_size)
    return {"w1": w1, "b1": b1, "w2": w2, "b2": b2, "w3": w3, "b3": b3}


def qnetwork_ref(x, p):
    h1 = jnp.maximum(x @ p["w1"] + p["b1"].reshape(1, -1), 0.0)
    h2 = jnp.maximum(h1 @ p["w2"] + p["b2"].reshape(1, -1), 0.0)
    return h2 @ p["w3"] + p["b3"].reshape(1, -1)


def qnetwork_ref_bf16(x, p):
    d = jnp.bfloat16
    dot = lambda a, b: jnp.dot(a.astype(d), b.astype(d),
                               preferred_element_type=jnp.float32)
    h1 = jnp.maximum(dot(x, p["w1"]) + p["b1"].reshape(1, -1), 0.0)
    h2 = jnp.maximum(dot(h1, p["w2"]) + p["b2"].reshape(1, -1), 0.0)
    return dot(h2, p["w3"]) + p["b3"].reshape(1, -1)


if __name__ == "__main__":
    key = jax.random.PRNGKey(0)
    k_param, k_x, k_x2 = jax.random.split(key, 3)

    # Mancala-like sizes: 14-pit board state -> 6 possible moves, batch of 2.
    batch, input_size, output_size = 2, 14, 6

    params = init_params(k_param, input_size, output_size)
    prepared_bf16 = prepare_params(params, matmul_dtype=jnp.bfloat16)
    prepared_f32 = prepare_params(params, matmul_dtype=jnp.float32)

    # --- small (B=2) per-step inference shape ---
    x = jax.random.normal(k_x, (batch, input_size), jnp.float32)

    out = jax.block_until_ready(qnetwork_forward(x, prepared_bf16))
    assert out.shape == (batch, output_size)

    ref_f32 = qnetwork_ref(x, params)
    ref_bf16 = qnetwork_ref_bf16(x, params)
    assert jnp.allclose(out, ref_bf16, atol=2e-3, rtol=2e-3), "bf16 path mismatch"
    assert jnp.allclose(out, ref_f32, atol=5e-2, rtol=5e-2), "bf16 vs f32 ref too far"

    # f32-operand path (same kernel; same default dot precision as the ref).
    out_f32 = jax.block_until_ready(qnetwork_forward(x, prepared_f32))
    assert jnp.allclose(out_f32, ref_f32, atol=1e-5, rtol=1e-5), "f32 path mismatch"

    # --- ragged batch (exercises cdiv grid, >=2 grid steps, masked tail block) ---
    batch2 = 37
    x2 = jax.random.normal(k_x2, (batch2, input_size), jnp.float32)
    out2 = jax.block_until_ready(qnetwork_forward(x2, prepared_bf16))
    assert out2.shape == (batch2, output_size)
    assert jnp.allclose(out2, qnetwork_ref_bf16(x2, params),
                        atol=2e-3, rtol=2e-3), "ragged-batch mismatch"

    print("KERNEL_OK")
</pallas_src>

<mosaic_0001>
module attributes {stable_mosaic.version = 11 : i64} {
  func.func @_qnet_kernel(%arg0: i32, %arg1: memref<16x14xf32, #tpu.memory_space<vmem>>, %arg2: memref<14x128xbf16, #tpu.memory_space<vmem>>, %arg3: memref<1x128xf32, #tpu.memory_space<vmem>>, %arg4: memref<128x128xbf16, #tpu.memory_space<vmem>>, %arg5: memref<1x128xf32, #tpu.memory_space<vmem>>, %arg6: memref<128x6xbf16, #tpu.memory_space<vmem>>, %arg7: memref<1x6xf32, #tpu.memory_space<vmem>>, %arg8: memref<16x6xf32, #tpu.memory_space<vmem>>) attributes {dimension_semantics = [#tpu.dimension_semantics<parallel>], iteration_bounds = array<i64: 1>, scalar_prefetch = 0 : i64, scratch_operands = 0 : i64, tpu.core_type = #tpu.core_type<tc>, window_params = [{transform_indices = @transform_0, window_bounds = array<i64: 16, 14>}, {pipeline_mode = #tpu.pipeline_mode<synchronous>, transform_indices = @transform_1, window_bounds = array<i64: 14, 128>}, {pipeline_mode = #tpu.pipeline_mode<synchronous>, transform_indices = @transform_2, window_bounds = array<i64: 1, 128>}, {pipeline_mode = #tpu.pipeline_mode<synchronous>, transform_indices = @transform_3, window_bounds = array<i64: 128, 128>}, {pipeline_mode = #tpu.pipeline_mode<synchronous>, transform_indices = @transform_4, window_bounds = array<i64: 1, 128>}, {pipeline_mode = #tpu.pipeline_mode<synchronous>, transform_indices = @transform_5, window_bounds = array<i64: 128, 6>}, {pipeline_mode = #tpu.pipeline_mode<synchronous>, transform_indices = @transform_6, window_bounds = array<i64: 1, 6>}, {transform_indices = @transform_7, window_bounds = array<i64: 16, 6>}]} {
    %c0 = arith.constant 0 : index
    %c0_0 = arith.constant 0 : index
    %0 = vector.load %arg1[%c0, %c0_0] : memref<16x14xf32, #tpu.memory_space<vmem>>, vector<16x14xf32>
    %1 = arith.truncf %0 : vector<16x14xf32> to vector<16x14xbf16>
    %c0_1 = arith.constant 0 : index
    %c0_2 = arith.constant 0 : index
    %2 = vector.load %arg2[%c0_1, %c0_2] : memref<14x128xbf16, #tpu.memory_space<vmem>>, vector<14x128xbf16>
    %cst = arith.constant dense<0.000000e+00> : vector<16x128xf32>
    %3 = tpu.matmul %1, %2, %cst {dimension_numbers = #tpu.dot_dimension_numbers<[1], [0], [0], [1], [0, 0, 1, 1], [], []>} : vector<16x14xbf16>, vector<14x128xbf16>, vector<16x128xf32> -> vector<16x128xf32>
    %c0_3 = arith.constant 0 : index
    %c0_4 = arith.constant 0 : index
    %4 = vector.load %arg3[%c0_3, %c0_4] : memref<1x128xf32, #tpu.memory_space<vmem>>, vector<1x128xf32>
    %5 = vector.broadcast %4 : vector<1x128xf32> to vector<16x128xf32>
    %6 = arith.addf %3, %5 : vector<16x128xf32>
    %cst_5 = arith.constant 0.000000e+00 : f32
    %7 = vector.broadcast %cst_5 : f32 to vector<16x128xf32>
    %8 = arith.maximumf %6, %7 : vector<16x128xf32>
    %9 = arith.truncf %8 : vector<16x128xf32> to vector<16x128xbf16>
    %c0_6 = arith.constant 0 : index
    %c0_7 = arith.constant 0 : index
    %10 = vector.load %arg4[%c0_6, %c0_7] : memref<128x128xbf16, #tpu.memory_space<vmem>>, vector<128x128xbf16>
    %cst_8 = arith.constant dense<0.000000e+00> : vector<16x128xf32>
    %11 = tpu.matmul %9, %10, %cst_8 {dimension_numbers = #tpu.dot_dimension_numbers<[1], [0], [0], [1], [0, 0, 1, 1], [], []>} : vector<16x128xbf16>, vector<128x128xbf16>, vector<16x128xf32> -> vector<16x128xf32>
    %c0_9 = arith.constant 0 : index
    %c0_10 = arith.constant 0 : index
    %12 = vector.load %arg5[%c0_9, %c0_10] : memref<1x128xf32, #tpu.memory_space<vmem>>, vector<1x128xf32>
    %13 = vector.broadcast %12 : vector<1x128xf32> to vector<16x128xf32>
    %14 = arith.addf %11, %13 : vector<16x128xf32>
    %cst_11 = arith.constant 0.000000e+00 : f32
    %15 = vector.broadcast %cst_11 : f32 to vector<16x128xf32>
    %16 = arith.maximumf %14, %15 : vector<16x128xf32>
    %17 = arith.truncf %16 : vector<16x128xf32> to vector<16x128xbf16>
    %c0_12 = arith.constant 0 : index
    %c0_13 = arith.constant 0 : index
    %18 = vector.load %arg6[%c0_12, %c0_13] : memref<128x6xbf16, #tpu.memory_space<vmem>>, vector<128x6xbf16>
    %cst_14 = arith.constant dense<0.000000e+00> : vector<16x6xf32>
    %19 = tpu.matmul %17, %18, %cst_14 {dimension_numbers = #tpu.dot_dimension_numbers<[1], [0], [0], [1], [0, 0, 1, 1], [], []>} : vector<16x128xbf16>, vector<128x6xbf16>, vector<16x6xf32> -> vector<16x6xf32>
    %c0_15 = arith.constant 0 : index
    %c0_16 = arith.constant 0 : index
    %20 = vector.load %arg7[%c0_15, %c0_16] : memref<1x6xf32, #tpu.memory_space<vmem>>, vector<1x6xf32>
    %21 = vector.broadcast %20 : vector<1x6xf32> to vector<16x6xf32>
    %22 = arith.addf %19, %21 : vector<16x6xf32>
    %c0_17 = arith.constant 0 : index
    %c0_18 = arith.constant 0 : index
    %23 = vector.load %arg8[%c0_17, %c0_18] : memref<16x6xf32, #tpu.memory_space<vmem>>, vector<16x6xf32>
    tpu.vector_store %arg8[%c0_17, %c0_18], %22 {strides = array<i32>} : memref<16x6xf32, #tpu.memory_space<vmem>>, vector<16x6xf32>,
    return
  }
  func.func @transform_0(%arg0: i32) -> (i32, i32) {
    %c0_i32 = arith.constant 0 : i32
    %c0_i32_0 = arith.constant 0 : i32
    return %arg0, %c0_i32 : i32, i32
  }
  func.func @transform_1(%arg0: i32) -> (i32, i32) {
    %c0_i32 = arith.constant 0 : i32
    %c0_i32_0 = arith.constant 0 : i32
    %c0_i32_1 = arith.constant 0 : i32
    return %c0_i32, %c0_i32_0 : i32, i32
  }
  func.func @transform_2(%arg0: i32) -> (i32, i32) {
    %c0_i32 = arith.constant 0 : i32
    %c0_i32_0 = arith.constant 0 : i32
    %c0_i32_1 = arith.constant 0 : i32
    return %c0_i32, %c0_i32_0 : i32, i32
  }
  func.func @transform_3(%arg0: i32) -> (i32, i32) {
    %c0_i32 = arith.constant 0 : i32
    %c0_i32_0 = arith.constant 0 : i32
    %c0_i32_1 = arith.constant 0 : i32
    return %c0_i32, %c0_i32_0 : i32, i32
  }
  func.func @transform_4(%arg0: i32) -> (i32, i32) {
    %c0_i32 = arith.constant 0 : i32
    %c0_i32_0 = arith.constant 0 : i32
    %c0_i32_1 = arith.constant 0 : i32
    return %c0_i32, %c0_i32_0 : i32, i32
  }
  func.func @transform_5(%arg0: i32) -> (i32, i32) {
    %c0_i32 = arith.constant 0 : i32
    %c0_i32_0 = arith.constant 0 : i32
    %c0_i32_1 = arith.constant 0 : i32
    return %c0_i32, %c0_i32_0 : i32, i32
  }
  func.func @transform_6(%arg0: i32) -> (i32, i32) {
    %c0_i32 = arith.constant 0 : i32
    %c0_i32_0 = arith.constant 0 : i32
    %c0_i32_1 = arith.constant 0 : i32
    return %c0_i32, %c0_i32_0 : i32, i32
  }
  func.func @transform_7(%arg0: i32) -> (i32, i32) {
    %c0_i32 = arith.constant 0 : i32
    %c0_i32_0 = arith.constant 0 : i32
    return %arg0, %c0_i32 : i32, i32
  }
}

</mosaic_0001>

<llo_original>
// kernel: tpu_custom_call.1
$region0: #{tpu_custom_call.1}
  #allocation0 [shape = 'u32[]', space=smem, size = 0x4, offset = 0x4, fixed_abs, tag = 'smem constant byte address 0x4 - core index']
  #allocation1 [shape = 'u32[144,128]{1,0:T(1,128)}', space=vmem, size = 0x12000, scoped, tag = 'internal scratch']
  %s0 = inlined_call_operand.vmem [shape: f32[2,14], index: 0, kind: input, shape index: {}]
  %s1 = inlined_call_operand.vmem [shape: bf16[14,128], index: 1, kind: input, shape index: {}]
  %s2 = inlined_call_operand.vmem [shape: f32[1,128], index: 2, kind: input, shape index: {}]
  %s3 = inlined_call_operand.vmem [shape: bf16[128,128], index: 3, kind: input, shape index: {}]
  %s4 = inlined_call_operand.vmem [shape: f32[1,128], index: 4, kind: input, shape index: {}]
  %s5 = inlined_call_operand.vmem [shape: bf16[128,6], index: 5, kind: input, shape index: {}]
  %s6 = inlined_call_operand.vmem [shape: f32[1,6], index: 6, kind: input, shape index: {}]
  %s7 = inlined_call_operand.hbm [shape: f32[2,6], index: 7, kind: output, shape index: {}]
  %s8 = sld [smem:[#allocation0]]
  $region38: #{tpu_custom_call.1} parent=0
    _
  %s10 = ssub.s32 1, %s8
  %s11 = scalar_select 0, %s10, %s8
  $region1: #{tpu_custom_call.1} parent=0
    #allocation2 [shape = 'u8[8192]{0}', space=vmem, size = 0x2000, scoped, tag = 'output window, operand 0, single buffered']
    #allocation3 [shape = 's32[1]{0}', space=sflag, size = 0x4, scoped, tag = 'scoped memory for tpu_custom_call.1']
    %12 = vsyncpa [#allocation3], 0
    // Predicated region
    $region2: #{tpu_custom_call.1} parent=1 // pred_check
      _
    $region3: #{tpu_custom_call.1} parent=1 // pred_check_branch
      %14 = sbr.rel (0) target = $region5
    $region4: #{tpu_custom_call.1} parent=1 // pred_region
      _
    $region5: #{tpu_custom_call.1} parent=1 // pred_fallthru
      _
    // Predicated region
    $region6: #{tpu_custom_call.1} parent=1 // pred_check
      _
    $region7: #{tpu_custom_call.1} parent=1 // pred_check_branch
      %16 = sbr.rel (0) target = $region9
    $region8: #{tpu_custom_call.1} parent=1 // pred_region
      _
    $region9: #{tpu_custom_call.1} parent=1 // pred_fallthru
      _
    // Predicated region
    $region10: #{tpu_custom_call.1} parent=1 // pred_check
      _
    $region11: #{tpu_custom_call.1} parent=1 // pred_check_branch
      %18 = sbr.rel (0) target = $region13
    $region12: #{tpu_custom_call.1} parent=1 // pred_region
      _
    $region13: #{tpu_custom_call.1} parent=1 // pred_fallthru
      _
    // Predicated region
    $region14: #{tpu_custom_call.1} parent=1 // pred_check
      _
    $region15: #{tpu_custom_call.1} parent=1 // pred_check_branch
      %20 = sbr.rel (0) target = $region17
    $region16: #{tpu_custom_call.1} parent=1 // pred_region
      _
    $region17: #{tpu_custom_call.1} parent=1 // pred_fallthru
      _
    // Predicated region
    $region18: #{tpu_custom_call.1} parent=1 // pred_check
      _
    $region19: #{tpu_custom_call.1} parent=1 // pred_check_branch
      %22 = sbr.rel (0) target = $region21
    $region20: #{tpu_custom_call.1} parent=1 // pred_region
      _
    $region21: #{tpu_custom_call.1} parent=1 // pred_fallthru
      _
    // Predicated region
    $region22: #{tpu_custom_call.1} parent=1 // pred_check
      _
    $region23: #{tpu_custom_call.1} parent=1 // pred_check_branch
      %24 = sbr.rel (0) target = $region25
    $region24: #{tpu_custom_call.1} parent=1 // pred_region
      _
    $region25: #{tpu_custom_call.1} parent=1 // pred_fallthru
      _
    // Predicated region
    $region26: #{tpu_custom_call.1} parent=1 // pred_check
      _
    $region27: #{tpu_custom_call.1} parent=1 // pred_check_branch
      %26 = sbr.rel (0) target = $region29
    $region28: #{tpu_custom_call.1} parent=1 // pred_region
      _
    $region29: #{tpu_custom_call.1} parent=1 // pred_fallthru
      _
    %v28 = vld [vmem:[%s0] sm:$0xff]
    %v29 = vld [vmem:[%s0 + $0x8] sm:$0xff]
    %v30 = vpack.c.bf16 %v29, %v28
    %v31 = vld [vmem:[%s1] sm:$0xf]
    %v32 = vld [vmem:[%s1 + $0x4] sm:$0x7]
    %v33 = vld [vmem:[%s2] sm:$0x1]
    %v35 = vlaneseq
    %v36 = vshrl.u32 %v35, 7
    %v37 = vsub.s32 0, %v36
    %v38 = vrot.slane %v33, %v37
    %v42 = vunpack.c.l.b16 %v31
    %v43 = vunpack.c.l.b16 %v32
    %v44 = vpack.c.b16 %v43, %v42
    %vm45 = vcmask 113664
    %v47 = vsel %vm45, %v30, 0
    %vm49 = vcmask 1046528
    %v51 = vsel %vm49, %v44, 0
    %53 = vmatprep.subr.bf16.mxu0 0
    %54 = vmatpush1.bf16.msra.mxu0 %v51
    %55 = vmatprep.subr.bf16.mxu0 0
    %56 = vmatpush1.bf16.msra.mxu0 0
    %57 = vmatprep.subr.bf16.mxu0 0
    %58 = vmatpush1.bf16.msra.mxu0 0
    %59 = vmatprep.subr.bf16.mxu0 0
    %60 = vmatpush1.bf16.msra.mxu0 0
    %61 = vmatprep.subr.bf16.mxu0 0
    %62 = vmatpush1.bf16.msra.mxu0 0
    %63 = vmatprep.subr.bf16.mxu0 0
    %64 = vmatpush1.bf16.msra.mxu0 0
    %65 = vmatprep.subr.bf16.mxu0 0
    %66 = vmatpush1.bf16.msra.mxu0 0
    %67 = vmatprep.subr.bf16.mxu0 0
    %68 = vmatpush1.bf16.msra.mxu0 0
    %69 = vmatprep.subr.bf16.mxu0 0
    %70 = vmatpush1.bf16.msra.mxu0 0
    %71 = vmatprep.subr.bf16.mxu0 0
    %72 = vmatpush1.bf16.msra.mxu0 0
    %73 = vmatprep.subr.bf16.mxu0 0
    %74 = vmatpush1.bf16.msra.mxu0 0
    %75 = vmatprep.subr.bf16.mxu0 0
    %76 = vmatpush1.bf16.msra.mxu0 0
    %77 = vmatprep.subr.bf16.mxu0 0
    %78 = vmatpush1.bf16.msra.mxu0 0
    %79 = vmatprep.subr.bf16.mxu0 0
    %80 = vmatpush1.bf16.msra.mxu0 0
    %81 = vmatprep.subr.bf16.mxu0 0
    %82 = vmatpush1.bf16.msra.mxu0 0
    %83 = vmatprep.subr.bf16.mxu0 0
    %84 = vmatpush1.bf16.msra.mxu0 0
    %85 = vmatprep.mubr.bf16.mxu0 0
    %86 = vmatmul.mubr.bf16.gmra.mrb[0].mxu0 %v47
    %v87 = vpop.f32.mrb[0].mxu0
    %v88 = vadd.f32 %v38, %v87
    %v89 = vpop.f32.mrb[0].mxu0
    %v90 = vpop.f32.mrb[0].mxu0
    %v91 = vadd.f32 %v38, %v90
    %v92 = vpop.f32.mrb[0].mxu0
    %93 = vdwg.mxu0
    %v94 = vmax.f32 %v88, 0.0
    %v95 = vmax.f32 %v91, 0.0
    %v96 = vpack.c.bf16 %v95, %v94
    %v97 = vld [vmem:[%s3] sm:$0xf]
    %v98 = vld [vmem:[%s3 + $0x4] sm:$0xf]
    %v99 = vld [vmem:[%s3 + $0x8] sm:$0xf]
    %v100 = vld [vmem:[%s3 + $0xc] sm:$0xf]
    %v101 = vld [vmem:[%s3 + $0x10] sm:$0xf]
    %v102 = vld [vmem:[%s3 + $0x14] sm:$0xf]
    %v103 = vld [vmem:[%s3 + $0x18] sm:$0xf]
    %v104 = vld [vmem:[%s3 + $0x1c] sm:$0xf]
    %v105 = vld [vmem:[%s3 + $0x20] sm:$0xf]
    %v106 = vld [vmem:[%s3 + $0x24] sm:$0xf]
    %v107 = vld [vmem:[%s3 + $0x28] sm:$0xf]
    %v108 = vld [vmem:[%s3 + $0x2c] sm:$0xf]
    %v109 = vld [vmem:[%s3 + $0x30] sm:$0xf]
    %v110 = vld [vmem:[%s3 + $0x34] sm:$0xf]
    %v111 = vld [vmem:[%s3 + $0x38] sm:$0xf]
    %v112 = vld [vmem:[%s3 + $0x3c] sm:$0xf]
    %v113 = vld [vmem:[%s4] sm:$0x1]
    %v115 = vlaneseq
    %v116 = vshrl.u32 %v115, 7
    %v117 = vsub.s32 0, %v116
    %v118 = vrot.slane %v113, %v117
    %v136 = vunpack.c.l.b16 %v97
    %v137 = vunpack.c.l.b16 %v98
    %v138 = vunpack.c.l.b16 %v99
    %v139 = vunpack.c.l.b16 %v100
    %v140 = vunpack.c.l.b16 %v101
    %v141 = vunpack.c.l.b16 %v102
    %v142 = vunpack.c.l.b16 %v103
    %v143 = vunpack.c.l.b16 %v104
    %v144 = vunpack.c.l.b16 %v105
    %v145 = vunpack.c.l.b16 %v106
    %v146 = vunpack.c.l.b16 %v107
    %v147 = vunpack.c.l.b16 %v108
    %v148 = vunpack.c.l.b16 %v109
    %v149 = vunpack.c.l.b16 %v110
    %v150 = vunpack.c.l.b16 %v111
    %v151 = vunpack.c.l.b16 %v112
    %v152 = vpack.c.b16 %v137, %v136
    %v153 = vpack.c.b16 %v139, %v138
    %v154 = vpack.c.b16 %v141, %v140
    %v155 = vpack.c.b16 %v143, %v142
    %v156 = vpack.c.b16 %v145, %v144
    %v157 = vpack.c.b16 %v147, %v146
    %v158 = vpack.c.b16 %v149, %v148
    %v159 = vpack.c.b16 %v151, %v150
    %168 = vmatprep.subr.bf16.mxu0 0
    %169 = vmatpush1.bf16.msra.mxu0 %v152
    %170 = vmatprep.subr.bf16.mxu0 0
    %171 = vmatpush1.bf16.msra.mxu0 %v153
    %172 = vmatprep.subr.bf16.mxu0 0
    %173 = vmatpush1.bf16.msra.mxu0 %v154
    %174 = vmatprep.subr.bf16.mxu0 0
    %175 = vmatpush1.bf16.msra.mxu0 %v155
    %176 = vmatprep.subr.bf16.mxu0 0
    %177 = vmatpush1.bf16.msra.mxu0 %v156
    %178 = vmatprep.subr.bf16.mxu0 0
    %179 = vmatpush1.bf16.msra.mxu0 %v157
    %180 = vmatprep.subr.bf16.mxu0 0
    %181 = vmatpush1.bf16.msra.mxu0 %v158
    %182 = vmatprep.subr.bf16.mxu0 0
    %183 = vmatpush1.bf16.msra.mxu0 %v159
    %184 = vmatprep.subr.bf16.mxu0 0
    %185 = vmatpush1.bf16.msra.mxu0 0
    %186 = vmatprep.subr.bf16.mxu0 0
    %187 = vmatpush1.bf16.msra.mxu0 0
    %188 = vmatprep.subr.bf16.mxu0 0
    %189 = vmatpush1.bf16.msra.mxu0 0
    %190 = vmatprep.subr.bf16.mxu0 0
    %191 = vmatpush1.bf16.msra.mxu0 0
    %192 = vmatprep.subr.bf16.mxu0 0
    %193 = vmatpush1.bf16.msra.mxu0 0
    %194 = vmatprep.subr.bf16.mxu0 0
    %195 = vmatpush1.bf16.msra.mxu0 0
    %196 = vmatprep.subr.bf16.mxu0 0
    %197 = vmatpush1.bf16.msra.mxu0 0
    %198 = vmatprep.subr.bf16.mxu0 0
    %199 = vmatpush1.bf16.msra.mxu0 0
    %200 = vmatprep.mubr.bf16.mxu0 0
    %201 = vmatmul.mubr.bf16.gmra.mrb[0].mxu0 %v96
    %v202 = vpop.f32.mrb[0].mxu0
    %v203 = vadd.f32 %v118, %v202
    %v204 = vpop.f32.mrb[0].mxu0
    %v205 = vpop.f32.mrb[0].mxu0
    %v206 = vadd.f32 %v118, %v205
    %v207 = vpop.f32.mrb[0].mxu0
    %208 = vdwg.mxu0
    %v209 = vmax.f32 %v203, 0.0
    %v210 = vmax.f32 %v206, 0.0
    %v211 = vpack.c.bf16 %v210, %v209
    %v212 = vld [vmem:[%s5] sm:$0xf]
    %v213 = vld [vmem:[%s5 + $0x4] sm:$0xf]
    %v214 = vld [vmem:[%s5 + $0x8] sm:$0xf]
    %v215 = vld [vmem:[%s5 + $0xc] sm:$0xf]
    %v216 = vld [vmem:[%s5 + $0x10] sm:$0xf]
    %v217 = vld [vmem:[%s5 + $0x14] sm:$0xf]
    %v218 = vld [vmem:[%s5 + $0x18] sm:$0xf]
    %v219 = vld [vmem:[%s5 + $0x1c] sm:$0xf]
    %v220 = vld [vmem:[%s5 + $0x20] sm:$0xf]
    %v221 = vld [vmem:[%s5 + $0x24] sm:$0xf]
    %v222 = vld [vmem:[%s5 + $0x28] sm:$0xf]
    %v223 = vld [vmem:[%s5 + $0x2c] sm:$0xf]
    %v224 = vld [vmem:[%s5 + $0x30] sm:$0xf]
    %v225 = vld [vmem:[%s5 + $0x34] sm:$0xf]
    %v226 = vld [vmem:[%s5 + $0x38] sm:$0xf]
    %v227 = vld [vmem:[%s5 + $0x3c] sm:$0xf]
    %v228 = vld [vmem:[%s6] sm:$0x1]
    %v230 = vlaneseq
    %v231 = vshrl.u32 %v230, 7
    %v232 = vsub.s32 0, %v231
    %v233 = vrot.slane %v228, %v232
    %v251 = vunpack.c.l.b16 %v212
    %v252 = vunpack.c.l.b16 %v213
    %v253 = vunpack.c.l.b16 %v214
    %v254 = vunpack.c.l.b16 %v215
    %v255 = vunpack.c.l.b16 %v216
    %v256 = vunpack.c.l.b16 %v217
    %v257 = vunpack.c.l.b16 %v218
    %v258 = vunpack.c.l.b16 %v219
    %v259 = vunpack.c.l.b16 %v220
    %v260 = vunpack.c.l.b16 %v221
    %v261 = vunpack.c.l.b16 %v222
    %v262 = vunpack.c.l.b16 %v223
    %v263 = vunpack.c.l.b16 %v224
    %v264 = vunpack.c.l.b16 %v225
    %v265 = vunpack.c.l.b16 %v226
    %v266 = vunpack.c.l.b16 %v227
    %v267 = vpack.c.b16 %v252, %v251
    %v268 = vpack.c.b16 %v254, %v253
    %v269 = vpack.c.b16 %v256, %v255
    %v270 = vpack.c.b16 %v258, %v257
    %v271 = vpack.c.b16 %v260, %v259
    %v272 = vpack.c.b16 %v262, %v261
    %v273 = vpack.c.b16 %v264, %v263
    %v274 = vpack.c.b16 %v266, %v265
    %283 = vmatprep.subr.bf16.mxu0 0
    %284 = vmatpush1.bf16.msra.mxu0 %v267
    %285 = vmatprep.subr.bf16.mxu0 0
    %286 = vmatpush1.bf16.msra.mxu0 %v268
    %287 = vmatprep.subr.bf16.mxu0 0
    %288 = vmatpush1.bf16.msra.mxu0 %v269
    %289 = vmatprep.subr.bf16.mxu0 0
    %290 = vmatpush1.bf16.msra.mxu0 %v270
    %291 = vmatprep.subr.bf16.mxu0 0
    %292 = vmatpush1.bf16.msra.mxu0 %v271
    %293 = vmatprep.subr.bf16.mxu0 0
    %294 = vmatpush1.bf16.msra.mxu0 %v272
    %295 = vmatprep.subr.bf16.mxu0 0
    %296 = vmatpush1.bf16.msra.mxu0 %v273
    %297 = vmatprep.subr.bf16.mxu0 0
    %298 = vmatpush1.bf16.msra.mxu0 %v274
    %299 = vmatprep.subr.bf16.mxu0 0
    %300 = vmatpush1.bf16.msra.mxu0 0
    %301 = vmatprep.subr.bf16.mxu0 0
    %302 = vmatpush1.bf16.msra.mxu0 0
    %303 = vmatprep.subr.bf16.mxu0 0
    %304 = vmatpush1.bf16.msra.mxu0 0
    %305 = vmatprep.subr.bf16.mxu0 0
    %306 = vmatpush1.bf16.msra.mxu0 0
    %307 = vmatprep.subr.bf16.mxu0 0
    %308 = vmatpush1.bf16.msra.mxu0 0
    %309 = vmatprep.subr.bf16.mxu0 0
    %310 = vmatpush1.bf16.msra.mxu0 0
    %311 = vmatprep.subr.bf16.mxu0 0
    %312 = vmatpush1.bf16.msra.mxu0 0
    %313 = vmatprep.subr.bf16.mxu0 0
    %314 = vmatpush1.bf16.msra.mxu0 0
    %315 = vmatprep.mubr.bf16.mxu0 0
    %316 = vmatmul.mubr.bf16.gmra.mrb[0].mxu0 %v211
    %v317 = vpop.f32.mrb[0].mxu0
    %v318 = vadd.f32 %v233, %v317
    %v319 = vpop.f32.mrb[0].mxu0
    %v320 = vpop.f32.mrb[0].mxu0
    %v321 = vadd.f32 %v233, %v320
    %v322 = vpop.f32.mrb[0].mxu0
    %323 = vdwg.mxu0
    %vm324 = vcmask 48128
    %325 = vst.msk [vmem:[#allocation2] sm:$0xff] %vm324, %v318
    %326 = vst.msk [vmem:[#allocation2 + $0x8] sm:$0xff] %vm324, %v321
    // Predicated region
    $region30: #{tpu_custom_call.1} parent=1 // pred_check
      _
    $region31: #{tpu_custom_call.1} parent=1 // pred_check_branch
      %328 = sbr.rel (0) target = $region33
    $region32: #{tpu_custom_call.1} parent=1 // pred_region
      %s330 = ssub.s32 256, 32
      %331 = vsyncadd [#allocation3], %s330
      %s332 = sshll.u32 [#allocation2], 4
      %s333 = int_to_ptr.vmem [resolvable:$true] %s332
      %338 = dma.vmem_to_hbm [thread:$0]  %s333, 32, %s7, [#allocation3], 32, 32, 2
    $region33: #{tpu_custom_call.1} parent=1 // pred_fallthru
      _
    // Predicated region
    $region34: #{tpu_custom_call.1} parent=1 // pred_check
      _
    $region35: #{tpu_custom_call.1} parent=1 // pred_check_branch
      %340 = sbr.rel (0) target = $region37
    $region36: #{tpu_custom_call.1} parent=1 // pred_region
      %341 = dma.done [#allocation3], 256
    $region37: #{tpu_custom_call.1} parent=1 // pred_fallthru
      _
    %342 = vsyncpa [#allocation3], 1

</llo_original>
